<compile_context>
chip_gen: v7x
topology: tpu7x:2x2x1
jax: 0.10.0
libtpu: 0.0.40
codegen_flags: <defaults>
</compile_context>

<pallas_src>
import jax
import jax.numpy as jnp
from jax import lax
from jax.experimental import pallas as pl
from jax.experimental.pallas import tpu as pltpu


def _round_up(x, m):
    return ((x + m - 1) // m) * m


def _ccd_kernel(x1_ref, x2_ref, sw_ref, b_ref, o_ref, acc_ref):
    """One (row-tile, feature-tile) grid step.

    x1_ref, x2_ref : [TR, TC]  input blocks (native dtype, lane-dense)
    sw_ref         : [GO, TC]  weight / masked-weight selector block
    b_ref          : [1]       bias (SMEM scalar)
    o_ref          : [GO, TR]  lane-dense sigmoid(logits) output block (f32)
    acc_ref        : [GO, TR]  f32 accumulator scratch (feature-axis reduction)
    """
    k = pl.program_id(1)

    @pl.when(k == 0)
    def _init():
        acc_ref[...] = jnp.zeros_like(acc_ref)

    z = jnp.abs(x1_ref[...] - x2_ref[...])          # VPU, stays in native dtype
    # [GO, TC] x [TR, TC]^T -> [GO, TR] on the (otherwise idle) MXU, f32 accum.
    # The NT contraction keeps the output block lane-dense (last dim = TR).
    acc_ref[...] += lax.dot_general(
        sw_ref[...], z,
        dimension_numbers=(((1,), (1,)), ((), ())),
        preferred_element_type=jnp.float32,
        precision=lax.Precision.HIGHEST)

    @pl.when(k == pl.num_programs(1) - 1)
    def _finish():
        o_ref[...] = jax.nn.sigmoid(acc_ref[...] + b_ref[0]).astype(o_ref.dtype)


def _pick_rows_tile(rows, row_bytes, vmem_budget_bytes):
    """Largest 128-aligned row tile fitting the VMEM budget, capped so the
    'parallel' grid axis keeps >= 2 tiles when possible (v7x has 2 TCs/chip)."""
    if rows <= 128:
        return rows                        # single full-extent tile
    align = 128                            # output block last dim: multiple of 128
    by_vmem = max(align, ((vmem_budget_bytes // row_bytes) // align) * align)
    at_least_two = _round_up(pl.cdiv(rows, 2), align)
    return min(by_vmem, at_least_two, _round_up(rows, align))


def _run_ccd_pallas(x1m, x2m, sw, bias_f32, *, d_tiles, vmem_budget_bytes):
    rows, cols = x1m.shape
    go = sw.shape[0]
    tc = cols // d_tiles
    itemsize = jnp.dtype(x1m.dtype).itemsize
    # Double-buffered inputs + double-buffered output block + f32 accumulator.
    go_pad = max(8, go)
    row_bytes = 2 * 2 * tc * itemsize + 3 * go_pad * 4
    tr = _pick_rows_tile(rows, row_bytes, vmem_budget_bytes)

    grid = (pl.cdiv(rows, tr), d_tiles)    # rows parallel, feature reduction last
    return pl.pallas_call(
        _ccd_kernel,
        out_shape=jax.ShapeDtypeStruct((go, rows), jnp.float32),
        grid=grid,
        in_specs=[
            pl.BlockSpec((tr, tc), lambda i, k: (i, k)),              # x1 tile
            pl.BlockSpec((tr, tc), lambda i, k: (i, k)),              # x2 tile
            pl.BlockSpec((go, tc), lambda i, k: (0, k)),              # weight/selector
            pl.BlockSpec(memory_space=pltpu.MemorySpace.SMEM),        # bias scalar
        ],
        out_specs=pl.BlockSpec((go, tr), lambda i, k: (0, i)),        # lane-dense out
        scratch_shapes=[pltpu.VMEM((go, tr), jnp.float32)],
        compiler_params=pltpu.CompilerParams(
            dimension_semantics=("parallel", "arbitrary"),
            vmem_limit_bytes=32 * 1024 * 1024),
    )(x1m, x2m, sw, bias_f32)


def ccd_bin_classifier_forward(x1, x2, weight, bias, *,
                               vmem_budget_bytes=12 * 1024 * 1024,
                               min_pallas_bytes=2 * 1024 * 1024,
                               feature_tile=None,
                               force_pallas=False):
    """CCDBinClassifier forward.  x1, x2: [B, D, 1, 1] (or [B, D]);
    weight: [1, D] (PyTorch Linear layout); bias: [1].  Returns f32 [B]."""
    B, D = x1.shape[0], x1.shape[1]
    # Glue: drop trailing 1x1 spatial dims (contiguous reshape).
    # TODO(synk): if the caller's [B,D,1,1] buffer carries a tile-padded layout,
    # this reshape (and the packed reshape below) may cost one relayout copy;
    # handing the kernel a [B, D] / flat array guarantees it is free.
    x1_2d = x1.reshape(B, D)
    x2_2d = x2.reshape(B, D)
    w_row = weight.reshape(1, D)
    bias_f32 = bias.reshape(1).astype(jnp.float32)
    itemsize = jnp.dtype(x1_2d.dtype).itemsize

    # Small-problem bypass: below the threshold, pallas_call fixed overhead
    # dominates; let XLA fuse the whole thing.
    if not force_pallas and 2 * B * D * itemsize < min_pallas_bytes:
        y = jnp.abs(x1_2d.astype(jnp.float32) - x2_2d.astype(jnp.float32))
        logits = jnp.sum(y * w_row.astype(jnp.float32), axis=-1) + bias_f32[0]
        return jax.nn.sigmoid(logits)

    compute_dtype = x1_2d.dtype

    if D < 128 and 128 % D == 0 and (B * D) % 128 == 0:
        # ---- Lane-dense packed path (covers the module's D = 32) ------------
        # Flat [B*D] viewed as [B*D/128, 128]: row q, lane l <-> batch q*G + l//D,
        # feature l % D  (G = 128 // D batch elements per packed row).
        g = 128 // D
        rows = (B * D) // 128
        xp1 = x1_2d.reshape(rows, 128)
        xp2 = x2_2d.reshape(rows, 128)
        # Selector SW[g, l] = weight[l % D] * (l // D == g): a single NT matmul
        # against it both applies the weight and sums each D-lane group.
        lane = jnp.arange(128)
        sw = jnp.where((lane // D)[None, :] == jnp.arange(g)[:, None],
                       jnp.tile(w_row[0], g)[None, :],
                       0.0).astype(compute_dtype)
        out_t = _run_ccd_pallas(xp1, xp2, sw, bias_f32, d_tiles=1,
                                vmem_budget_bytes=vmem_budget_bytes)
        # [G, B//G] -> [B]: tiny transpose of B floats, done once in XLA.
        return out_t.T.reshape(B)

    # ---- Generic path (D >= 128, or feature dim not packable) ----------------
    # TODO(synk): D < 128 with 128 % D != 0 (e.g. D = 40) still pays lane
    # padding on the feature axis; packing with a padded feature stride would
    # recover it but is not implemented here.
    tc = D
    if feature_tile is not None:
        assert D % feature_tile == 0 and feature_tile % 128 == 0
        tc = feature_tile
    elif D % 128 == 0 and D > 128:
        # Split the feature axis only if a minimal (128 x D) double-buffered
        # input pair would not fit the VMEM budget (very large D).
        if 2 * 2 * 128 * D * itemsize > vmem_budget_bytes:
            for cand in (2048, 1024, 512, 256, 128):
                if D % cand == 0 and 2 * 2 * 128 * cand * itemsize <= vmem_budget_bytes:
                    tc = cand
                    break
            else:
                tc = 128
    d_tiles = D // tc
    sw = w_row.astype(compute_dtype)
    out = _run_ccd_pallas(x1_2d, x2_2d, sw, bias_f32, d_tiles=d_tiles,
                          vmem_budget_bytes=vmem_budget_bytes)
    return out[0]


# ----------------------------- self test -------------------------------------

def _reference(x1, x2, weight, bias):
    B, D = x1.shape[0], x1.shape[1]
    y = jnp.abs(x1.reshape(B, D).astype(jnp.float32) -
                x2.reshape(B, D).astype(jnp.float32))
    logits = jnp.sum(y * weight.reshape(1, D).astype(jnp.float32), axis=-1)
    return jax.nn.sigmoid(logits + bias.astype(jnp.float32)[0])


def _make_inputs(key, b, d, dtype):
    k1, k2, kw, kb = jax.random.split(key, 4)
    x1 = jax.random.normal(k1, (b, d, 1, 1), dtype=jnp.float32).astype(dtype)
    x2 = jax.random.normal(k2, (b, d, 1, 1), dtype=jnp.float32).astype(dtype)
    bound = 1.0 / (d ** 0.5)                 # PyTorch nn.Linear default init range
    weight = jax.random.uniform(kw, (1, d), minval=-bound, maxval=bound,
                                dtype=jnp.float32).astype(dtype)
    bias = jax.random.uniform(kb, (1,), minval=-bound, maxval=bound,
                              dtype=jnp.float32)
    return x1, x2, weight, bias


if __name__ == "__main__":
    key = jax.random.PRNGKey(0)
    cases = [
        # (name, B, D, dtype, kwargs, atol)
        ("module_cfg_bypass", 4, 32, jnp.float32, {}, 1e-5),
        ("module_cfg_pallas", 4, 32, jnp.float32, dict(force_pallas=True), 2e-3),
        ("packed_multi_tile", 1056, 32, jnp.float32, dict(force_pallas=True), 2e-3),
        ("packed_bf16", 1056, 32, jnp.bfloat16, dict(force_pallas=True), 3e-2),
        ("generic_unpacked", 300, 40, jnp.float32, dict(force_pallas=True), 2e-3),
        ("feature_split", 136, 384, jnp.float32,
         dict(force_pallas=True, feature_tile=128), 2e-3),
    ]
    for name, b, d, dtype, kwargs, atol in cases:
        key, sub = jax.random.split(key)
        x1, x2, weight, bias = _make_inputs(sub, b, d, dtype)
        out = jax.block_until_ready(
            ccd_bin_classifier_forward(x1, x2, weight, bias, **kwargs))
        ref = _reference(x1, x2, weight, bias)
        assert out.shape == (b,), (name, out.shape)
        err = float(jnp.max(jnp.abs(out - ref)))
        assert err <= atol, (name, err, atol)
    print("KERNEL_OK")
</pallas_src>

<mosaic_0001>
module attributes {stable_mosaic.version = 11 : i64} {
  func.func @_ccd_kernel(%arg0: i32, %arg1: i32, %arg2: memref<1x128xf32, #tpu.memory_space<vmem>>, %arg3: memref<1x128xf32, #tpu.memory_space<vmem>>, %arg4: memref<4x128xf32, #tpu.memory_space<vmem>>, %arg5: memref<1xf32, #tpu.memory_space<smem>>, %arg6: memref<4x1xf32, #tpu.memory_space<vmem>>, %arg7: memref<4x1xf32, #tpu.memory_space<vmem>>) attributes {dimension_semantics = [#tpu.dimension_semantics<parallel>, #tpu.dimension_semantics<arbitrary>], iteration_bounds = array<i64: 1, 1>, scalar_prefetch = 0 : i64, scratch_operands = 1 : i64, tpu.core_type = #tpu.core_type<tc>, window_params = [{transform_indices = @transform_0, window_bounds = array<i64: 1, 128>}, {transform_indices = @transform_1, window_bounds = array<i64: 1, 128>}, {transform_indices = @transform_2, window_bounds = array<i64: 4, 128>}, {transform_indices = @transform_3, window_bounds = array<i64: 1>}, {transform_indices = @transform_4, window_bounds = array<i64: 4, 1>}]} {
    %c0_i32 = arith.constant 0 : i32
    %0 = arith.cmpi eq, %arg1, %c0_i32 : i32
    %1 = arith.extui %0 : i1 to i32
    %c0_i32_0 = arith.constant 0 : i32
    %2 = arith.cmpi ne, %1, %c0_i32_0 : i32
    scf.if %2 {
      %cst_12 = arith.constant 0.000000e+00 : f32
      %15 = vector.broadcast %cst_12 : f32 to vector<4x1xf32>
      %c0_13 = arith.constant 0 : index
      %c0_14 = arith.constant 0 : index
      %16 = vector.load %arg7[%c0_13, %c0_14] : memref<4x1xf32, #tpu.memory_space<vmem>>, vector<4x1xf32>
      tpu.vector_store %arg7[%c0_13, %c0_14], %15 {strides = array<i32>} : memref<4x1xf32, #tpu.memory_space<vmem>>, vector<4x1xf32>,
    } else {
    }
    %c0 = arith.constant 0 : index
    %c0_1 = arith.constant 0 : index
    %3 = vector.load %arg2[%c0, %c0_1] : memref<1x128xf32, #tpu.memory_space<vmem>>, vector<1x128xf32>
    %c0_2 = arith.constant 0 : index
    %c0_3 = arith.constant 0 : index
    %4 = vector.load %arg3[%c0_2, %c0_3] : memref<1x128xf32, #tpu.memory_space<vmem>>, vector<1x128xf32>
    %5 = arith.subf %3, %4 : vector<1x128xf32>
    %6 = math.absf %5 : vector<1x128xf32>
    %c0_4 = arith.constant 0 : index
    %c0_5 = arith.constant 0 : index
    %7 = vector.load %arg7[%c0_4, %c0_5] : memref<4x1xf32, #tpu.memory_space<vmem>>, vector<4x1xf32>
    %c0_6 = arith.constant 0 : index
    %c0_7 = arith.constant 0 : index
    %8 = vector.load %arg4[%c0_6, %c0_7] : memref<4x128xf32, #tpu.memory_space<vmem>>, vector<4x128xf32>
    %cst = arith.constant dense<0.000000e+00> : vector<4x1xf32>
    %9 = tpu.matmul %8, %6, %cst {dimension_numbers = #tpu.dot_dimension_numbers<[1], [1], [0], [0], [0, 0, 1, 0], [], []>, precision = #tpu.contract_precision<fp32>} : vector<4x128xf32>, vector<1x128xf32>, vector<4x1xf32> -> vector<4x1xf32>
    %10 = arith.addf %7, %9 : vector<4x1xf32>
    %c0_8 = arith.constant 0 : index
    %c0_9 = arith.constant 0 : index
    %11 = vector.load %arg7[%c0_8, %c0_9] : memref<4x1xf32, #tpu.memory_space<vmem>>, vector<4x1xf32>
    tpu.vector_store %arg7[%c0_8, %c0_9], %10 {strides = array<i32>} : memref<4x1xf32, #tpu.memory_space<vmem>>, vector<4x1xf32>,
    %c0_i32_10 = arith.constant 0 : i32
    %12 = arith.cmpi eq, %arg1, %c0_i32_10 : i32
    %13 = arith.extui %12 : i1 to i32
    %c0_i32_11 = arith.constant 0 : i32
    %14 = arith.cmpi ne, %13, %c0_i32_11 : i32
    scf.if %14 {
      %c0_12 = arith.constant 0 : index
      %c0_13 = arith.constant 0 : index
      %15 = vector.load %arg7[%c0_12, %c0_13] : memref<4x1xf32, #tpu.memory_space<vmem>>, vector<4x1xf32>
      %c0_14 = arith.constant 0 : index
      %16 = memref.load %arg5[%c0_14] : memref<1xf32, #tpu.memory_space<smem>>
      %17 = vector.broadcast %16 : f32 to vector<4x1xf32>
      %18 = arith.addf %15, %17 : vector<4x1xf32>
      %19 = arith.negf %18 : vector<4x1xf32>
      %20 = math.exp %19 : vector<4x1xf32>
      %cst_15 = arith.constant 1.000000e+00 : f32
      %21 = vector.broadcast %cst_15 : f32 to vector<4x1xf32>
      %22 = arith.addf %21, %20 : vector<4x1xf32>
      %23 = arith.divf %21, %22 : vector<4x1xf32>
      %c0_16 = arith.constant 0 : index
      %c0_17 = arith.constant 0 : index
      %24 = vector.load %arg6[%c0_16, %c0_17] : memref<4x1xf32, #tpu.memory_space<vmem>>, vector<4x1xf32>
      tpu.vector_store %arg6[%c0_16, %c0_17], %23 {strides = array<i32>} : memref<4x1xf32, #tpu.memory_space<vmem>>, vector<4x1xf32>,
    } else {
    }
    return
  }
  func.func @transform_0(%arg0: i32, %arg1: i32) -> (i32, i32) {
    %c0_i32 = arith.constant 0 : i32
    return %arg0, %arg1 : i32, i32
  }
  func.func @transform_1(%arg0: i32, %arg1: i32) -> (i32, i32) {
    %c0_i32 = arith.constant 0 : i32
    return %arg0, %arg1 : i32, i32
  }
  func.func @transform_2(%arg0: i32, %arg1: i32) -> (i32, i32) {
    %c0_i32 = arith.constant 0 : i32
    %c0_i32_0 = arith.constant 0 : i32
    return %c0_i32, %arg1 : i32, i32
  }
  func.func @transform_3(%arg0: i32, %arg1: i32) -> i32 {
    %c0_i32 = arith.constant 0 : i32
    %c0_i32_0 = arith.constant 0 : i32
    return %c0_i32 : i32
  }
  func.func @transform_4(%arg0: i32, %arg1: i32) -> (i32, i32) {
    %c0_i32 = arith.constant 0 : i32
    %c0_i32_0 = arith.constant 0 : i32
    return %c0_i32, %arg0 : i32, i32
  }
}

</mosaic_0001>

<llo_original>
// kernel: tpu_custom_call.1
$region0: #{tpu_custom_call.1}
  #allocation0 [shape = 'u32[]', space=smem, size = 0x4, offset = 0x4, fixed_abs, tag = 'smem constant byte address 0x4 - core index']
  #allocation1 [shape = 'u32[144,128]{1,0:T(1,128)}', space=vmem, size = 0x12000, scoped, tag = 'internal scratch']
  #allocation2 [shape = 'f32[4,1]{1,0:T(4,128)}', space=vmem, size = 0x800, scoped, tag = 'scratch operand']
  #allocation3 [shape = 'f32[1]{0:T(128)S(6)}', space=smem, size = 0x200, scoped, tag = 'scoped memory for tpu_custom_call.1']
  %s0 = inlined_call_operand.vmem [shape: f32[1,128], index: 0, kind: input, shape index: {}]
  %s1 = inlined_call_operand.vmem [shape: f32[1,128], index: 1, kind: input, shape index: {}]
  %s2 = inlined_call_operand.vmem [shape: f32[4,128], index: 2, kind: input, shape index: {}]
  %s3 = inlined_call_operand.<no memory space> [shape: f32[1], index: 3, kind: input, shape index: {}]
  %s4 = inlined_call_operand.vmem [shape: f32[4,1], index: 4, kind: output, shape index: {}]
  %s5 = sld [smem:[#allocation0]]
  $region34: #{tpu_custom_call.1} parent=0
    _
  %s7 = ssub.s32 1, %s5
  %s8 = scalar_select 0, %s7, %s5
  %9 = sst [smem:[#allocation3]] %s3
  // Predicated region
  $region2: #{tpu_custom_call.1} parent=0 // pred_check
    _
  $region3: #{tpu_custom_call.1} parent=0 // pred_check_branch
    %11 = sbr.rel (0) target = $region5
  $region4: #{tpu_custom_call.1} parent=0 // pred_region
    _
  $region5: #{tpu_custom_call.1} parent=0 // pred_fallthru
    _
  // Predicated region
  $region6: #{tpu_custom_call.1} parent=0 // pred_check
    _
  $region7: #{tpu_custom_call.1} parent=0 // pred_check_branch
    %13 = sbr.rel (0) target = $region9
  $region8: #{tpu_custom_call.1} parent=0 // pred_region
    _
  $region9: #{tpu_custom_call.1} parent=0 // pred_fallthru
    _
  // Predicated region
  $region10: #{tpu_custom_call.1} parent=0 // pred_check
    _
  $region11: #{tpu_custom_call.1} parent=0 // pred_check_branch
    %15 = sbr.rel (0) target = $region13
  $region12: #{tpu_custom_call.1} parent=0 // pred_region
    _
  $region13: #{tpu_custom_call.1} parent=0 // pred_fallthru
    _
  // Predicated region
  $region14: #{tpu_custom_call.1} parent=0 // pred_check
    _
  $region15: #{tpu_custom_call.1} parent=0 // pred_check_branch
    %17 = sbr.rel (0) target = $region17
  $region16: #{tpu_custom_call.1} parent=0 // pred_region
    _
  $region17: #{tpu_custom_call.1} parent=0 // pred_fallthru
    _
  %p18 = scmp.eq.s32.totalorder 0, 0
  // Predicated region
  $region18: #{tpu_custom_call.1} parent=0 // pred_check
    %p19 = pneg %p18
  $region19: #{tpu_custom_call.1} parent=0 // pred_check_branch
    %21 = sbr.rel (%p19) target = $region21
  $region20: #{tpu_custom_call.1} parent=0 // pred_region
    %vm22 = vcmask 3072
    %23 = vst.msk [vmem:[#allocation2] sm:$0xf] %vm22, 0.0
  $region21: #{tpu_custom_call.1} parent=0 // pred_fallthru
    _
  %v24 = vld [vmem:[%s0] sm:$0x1]
  %v25 = vld [vmem:[%s1] sm:$0x1]
  %v26 = vsub.f32 %v24, %v25
  %v27 = vand.u32 2147483647, %v26
  %v28 = vld [vmem:[#allocation2] sm:$0xf]
  %v29 = vld [vmem:[%s2] sm:$0xf]
  %v31 = vlaneseq
  %v32 = vshrl.u32 %v31, 7
  %v33 = vsub.s32 0, %v32
  %v34 = vrot.slane %v27, %v33
  %v36 = vmul.f32 %v29, %v34
  %vm37 = vcmask 1043456
  %v38 = vsel %vm37, %v36, 0.0
  %39 = vadd.xlane.f32.xlu0 %v38
  %v40 = vpop.xlane.xlu0 %39
  %v41 = vadd.f32 %v28, %v40
  %vm42 = vcmask 3072
  %43 = vst.msk [vmem:[#allocation2] sm:$0xf] %vm42, %v41
  // Predicated region
  $region22: #{tpu_custom_call.1} parent=0 // pred_check
    %p44 = pneg %p18
  $region23: #{tpu_custom_call.1} parent=0 // pred_check_branch
    %46 = sbr.rel (%p44) target = $region25
  $region24: #{tpu_custom_call.1} parent=0 // pred_region
    %v47 = vld [vmem:[#allocation2] sm:$0xf]
    %s48 = sld [smem:[#allocation3]]
    %v49 = vstv %s48
    %v50 = vadd.f32 %v47, %v49
    %v51 = vxor.u32 %v50, 2147483648
    %v52 = vmul.f32 %v51, 1.442695
    %v53 = vpow.pop %v52
    %v54 = vadd.f32 %v53, 1.0
    %v55 = vrcp.pop %v54
    %v56 = vmul.f32 1.0, %v55
    %57 = vst.msk [vmem:[%s4] sm:$0xf] %vm42, %v56
  $region25: #{tpu_custom_call.1} parent=0 // pred_fallthru
    _
  // Predicated region
  $region26: #{tpu_custom_call.1} parent=0 // pred_check
    _
  $region27: #{tpu_custom_call.1} parent=0 // pred_check_branch
    %59 = sbr.rel (0) target = $region29
  $region28: #{tpu_custom_call.1} parent=0 // pred_region
    _
  $region29: #{tpu_custom_call.1} parent=0 // pred_fallthru
    _
  // Predicated region
  $region30: #{tpu_custom_call.1} parent=0 // pred_check
    _
  $region31: #{tpu_custom_call.1} parent=0 // pred_check_branch
    %61 = sbr.rel (0) target = $region33
  $region32: #{tpu_custom_call.1} parent=0 // pred_region
    _
  $region33: #{tpu_custom_call.1} parent=0 // pred_fallthru
    _

</llo_original>
